<compile_context>
chip_gen: v7x
topology: tpu7x:2x2x1
jax: 0.10.0
libtpu: 0.0.40
codegen_flags: <defaults>
</compile_context>

<pallas_src>
import functools

import jax
import jax.numpy as jnp
import numpy as np
from jax.experimental import pallas as pl
from jax.experimental.pallas import tpu as pltpu


def _round_up(x, m):
    return (x + m - 1) // m * m


# ----------------------------------------------------------------------------
# Plain-JAX glue: ball query + gather (data-dependent; matches pytorch3d/PyTorch)
# TODO(synk): for large N, tile the O(B*S*N) distance matrix (or fuse the ball
# query into a Pallas kernel over N-chunks) instead of materializing it densely.
# ----------------------------------------------------------------------------
def ball_query(p1, p2, K, radius):
    """First-K-in-index-order neighbors of p1 in p2 with dist^2 < radius^2.
    Returns idx [B, S, K] padded with -1 (pytorch3d.ball_query semantics)."""
    B, S, _ = p1.shape
    N = p2.shape[1]
    d2 = jnp.sum((p1[:, :, None, :] - p2[:, None, :, :]) ** 2, axis=-1)  # [B,S,N]
    within = d2 < radius * radius
    rank = jnp.cumsum(within.astype(jnp.int32), axis=-1) - 1              # slot per hit
    slot = jnp.where(within & (rank < K), rank, K)                        # overflow -> K
    j = jnp.broadcast_to(jnp.arange(N, dtype=jnp.int32), (B, S, N))
    b_idx = jnp.arange(B, dtype=jnp.int32)[:, None, None]
    s_idx = jnp.arange(S, dtype=jnp.int32)[None, :, None]
    idx = jnp.full((B, S, K + 1), -1, dtype=jnp.int32)
    idx = idx.at[b_idx, s_idx, slot].set(j)
    return idx[..., :K]


def index_points(points, idx):
    """points [B,N,C], idx [B,S,K] (may contain -1 -> last element, like PyTorch)."""
    Np = points.shape[1]
    idx_w = jnp.where(idx < 0, Np - 1, idx)
    b_idx = jnp.arange(points.shape[0], dtype=jnp.int32)[:, None, None]
    return points[b_idx, idx_w]                                           # [B,S,K,C]


def sample_and_group(ratio, radius, nsample, xyz, points):
    B, N, C = xyz.shape
    S = int(ratio * N)
    # TODO(synk): sample_farthest_points path (ratio != 1.0) not implemented.
    assert S == N, "only ratio=1.0 (no FPS) is supported in this synthetic kernel"
    new_xyz = xyz
    idx = ball_query(new_xyz, xyz, nsample, radius)
    mask = idx != -1
    grouped_xyz = index_points(xyz, idx)
    grouped_xyz_norm = grouped_xyz - new_xyz[:, :, None, :]
    grouped_points = index_points(points, idx)
    new_points = jnp.concatenate([grouped_xyz_norm, grouped_points], axis=-1)
    return new_xyz, new_points, mask


# ----------------------------------------------------------------------------
# Pallas kernel: folded-K pointwise MLP (Lin->ReLU->Lin->ReLU) + mask + max-pool
# ----------------------------------------------------------------------------
def _sa_mlp_maxpool_kernel(x_ref, mask_ref, w1_ref, b1_ref, w2_ref, b2_ref, out_ref):
    # x_ref:    (ts*K, Cin)  grouped features, rows ordered (point, neighbor)
    # mask_ref: (ts*K, 1)    neighbor validity (f32)
    # w1/b1/w2/b2: MLP params (weights in compute dtype, biases f32)
    # out_ref:  (ts, Cout)   max over K of masked MLP outputs
    ts, cout = out_ref.shape
    k = x_ref.shape[0] // ts

    # Layer 1: one big MXU matmul over all ts*K rows, f32 accumulate.
    h = jnp.dot(x_ref[...], w1_ref[...], preferred_element_type=jnp.float32)
    h = jnp.maximum(h + b1_ref[...], 0.0)                       # ReLU in f32
    # Layer 2: cast activations to the matmul dtype, f32 accumulate.
    y = jnp.dot(h.astype(w2_ref.dtype), w2_ref[...],
                preferred_element_type=jnp.float32)
    y = jnp.maximum(y + b2_ref[...], 0.0)                       # ReLU in f32
    y = y * mask_ref[...]                                       # zero invalid neighbors

    # Max over the K neighbor axis (sublane reduction per point).
    pooled = jnp.max(y.reshape(ts, k, cout), axis=1)
    out_ref[...] = pooled.astype(out_ref.dtype)


def sa_conv_maxpool(new_points, mask, w1, b1, w2, b2, *, tile_rows=256,
                    compute_dtype=jnp.bfloat16):
    """new_points [B,S,K,Cin], mask [B,S,K] -> pooled [B,S,Cout] via Pallas."""
    B, S, K, Cin = new_points.shape
    H = w1.shape[1]
    Cout = w2.shape[1]
    M = B * S

    # Pad feature / neighbor dims to multiples of 8 (zero feature columns pad
    # W1 rows with zeros; padded neighbor slots get mask = 0 so they never win
    # the max since all pooled candidates are >= 0 after ReLU * mask).
    Cin_p = _round_up(Cin, 8)
    K_p = _round_up(K, 8)

    # Row tile: as big as requested (256-512 is the sweet spot), but keep at
    # least 2 grid steps so both v7x TensorCores get work via "parallel".
    tile_rows = _round_up(tile_rows, 8)
    ts = min(tile_rows, max(8, _round_up(pl.cdiv(M, 2), 8)))
    Mp = _round_up(M, ts)

    # Grouped features: cast to compute dtype (halves input DMA bytes), pad,
    # and flatten to [Mp*K_p, Cin_p] (plain reshape; no host-side transpose).
    xg = new_points.astype(compute_dtype)
    xg = jnp.pad(xg, ((0, 0), (0, 0), (0, K_p - K), (0, Cin_p - Cin)))
    x2d = xg.reshape(M * K_p, Cin_p)
    x2d = jnp.pad(x2d, ((0, (Mp - M) * K_p), (0, 0)))

    mg = mask.astype(jnp.float32)
    mg = jnp.pad(mg, ((0, 0), (0, 0), (0, K_p - K)))
    m2d = mg.reshape(M * K_p, 1)
    m2d = jnp.pad(m2d, ((0, (Mp - M) * K_p), (0, 0)))

    w1p = jnp.pad(w1, ((0, Cin_p - Cin), (0, 0))).astype(compute_dtype)
    w2p = w2.astype(compute_dtype)
    b1f = b1.astype(jnp.float32)
    b2f = b2.astype(jnp.float32)

    tk = ts * K_p
    n_steps = Mp // ts

    # Advisory cost estimate (helps XLA scheduling around the custom call).
    flops = 2 * Mp * K_p * (Cin_p * H + H * Cout)
    bytes_accessed = (
        Mp * K_p * Cin_p * 2          # grouped features (bf16)
        + Mp * K_p * 4                # mask (f32)
        + (Cin_p * H + H * Cout) * 2  # weights (bf16)
        + (H + Cout) * 4              # biases (f32)
        + Mp * Cout * 4)              # output (f32)
    cost = pl.CostEstimate(flops=flops, transcendentals=0,
                           bytes_accessed=bytes_accessed)

    out = pl.pallas_call(
        _sa_mlp_maxpool_kernel,
        out_shape=jax.ShapeDtypeStruct((Mp, Cout), jnp.float32),
        grid_spec=pltpu.PrefetchScalarGridSpec(
            num_scalar_prefetch=0,
            grid=(n_steps,),
            in_specs=[
                pl.BlockSpec((tk, Cin_p), lambda i: (i, 0)),   # grouped features
                pl.BlockSpec((tk, 1), lambda i: (i, 0)),       # validity mask
                pl.BlockSpec((Cin_p, H), lambda i: (0, 0)),    # W1
                pl.BlockSpec((1, H), lambda i: (0, 0)),        # b1
                pl.BlockSpec((H, Cout), lambda i: (0, 0)),     # W2
                pl.BlockSpec((1, Cout), lambda i: (0, 0)),     # b2
            ],
            out_specs=pl.BlockSpec((ts, Cout), lambda i: (i, 0)),
        ),
        compiler_params=pltpu.CompilerParams(
            dimension_semantics=("parallel",)),
        cost_estimate=cost,
    )(x2d, m2d, w1p, b1f, w2p, b2f)
    return out[:M].reshape(B, S, Cout)


# ----------------------------------------------------------------------------
# SAModule.forward
# ----------------------------------------------------------------------------
def sa_module_forward(x, pos, params, *, ratio=1.0, radius=0.4,
                      max_num_neighbors=8, tile_rows=256,
                      compute_dtype=jnp.bfloat16):
    w1, b1, w2, b2 = params
    new_xyz, new_points, mask = sample_and_group(
        ratio, radius, max_num_neighbors, pos, x)
    pooled = sa_conv_maxpool(new_points, mask, w1, b1, w2, b2,
                             tile_rows=tile_rows, compute_dtype=compute_dtype)
    return pooled, new_xyz


# Pure-JAX reference of the same forward (for correctness checks).  The
# compute_dtype argument mirrors the kernel's matmul-input cast so the kernel
# can be checked to tight (1e-5) tolerance against identical arithmetic.
def sa_module_reference(x, pos, params, *, ratio=1.0, radius=0.4,
                        max_num_neighbors=8, compute_dtype=jnp.float32):
    w1, b1, w2, b2 = params
    new_xyz, new_points, mask = sample_and_group(
        ratio, radius, max_num_neighbors, pos, x)
    xg = new_points.astype(compute_dtype)
    h = jnp.maximum(
        jnp.dot(xg, w1.astype(compute_dtype),
                preferred_element_type=jnp.float32) + b1[0].astype(jnp.float32),
        0.0)
    y = jnp.maximum(
        jnp.dot(h.astype(compute_dtype), w2.astype(compute_dtype),
                preferred_element_type=jnp.float32) + b2[0].astype(jnp.float32),
        0.0)
    y = y * mask[..., None].astype(jnp.float32)
    return jnp.max(y, axis=2), new_xyz


if __name__ == "__main__":
    key = jax.random.PRNGKey(0)
    B, N, D, C = 2, 32, 13, 3          # batch, points, point-feature dim, coord dim
    Kn = 8                             # max_num_neighbors
    radius = 0.4
    ratio = 1.0
    Cin = C + D                        # 3 + D (grouped xyz-offset ++ point feats)
    H, Cout = 32, 32                   # hidden / output width of the pointwise MLP

    kx, kp, kw1, kb1, kw2, kb2 = jax.random.split(key, 6)
    x = jax.random.normal(kx, (B, N, D), jnp.float32)
    pos = jax.random.uniform(kp, (B, N, C), jnp.float32)

    # Deterministic synthetic MLP parameters (the module's `nn`/`conv`).
    w1 = 0.1 * jax.random.normal(kw1, (Cin, H), jnp.float32)
    b1 = 0.1 * jax.random.normal(kb1, (1, H), jnp.float32)
    w2 = 0.1 * jax.random.normal(kw2, (H, Cout), jnp.float32)
    b2 = 0.1 * jax.random.normal(kb2, (1, Cout), jnp.float32)
    params = (w1, b1, w2, b2)

    fwd = jax.jit(functools.partial(
        sa_module_forward, ratio=ratio, radius=radius,
        max_num_neighbors=Kn, compute_dtype=jnp.bfloat16))
    new_points, new_xyz = fwd(x, pos, params)
    jax.block_until_ready((new_points, new_xyz))

    # Tight check against a reference using the same bf16 matmul-input casts
    # (catches any layout / transposition bug introduced by the K-folding).
    ref_points_bf16, ref_xyz = sa_module_reference(
        x, pos, params, ratio=ratio, radius=radius, max_num_neighbors=Kn,
        compute_dtype=jnp.bfloat16)
    np.testing.assert_allclose(np.asarray(new_xyz), np.asarray(ref_xyz))
    np.testing.assert_allclose(
        np.asarray(new_points), np.asarray(ref_points_bf16), rtol=1e-5, atol=1e-5)

    # Loose check against the full-f32 module semantics (only bf16 rounding of
    # the matmul inputs separates the two).
    ref_points_f32, _ = sa_module_reference(
        x, pos, params, ratio=ratio, radius=radius, max_num_neighbors=Kn,
        compute_dtype=jnp.float32)
    np.testing.assert_allclose(
        np.asarray(new_points), np.asarray(ref_points_f32), rtol=2e-2, atol=2e-2)

    print("KERNEL_OK")
</pallas_src>

<mosaic_0001>
module attributes {stable_mosaic.version = 11 : i64} {
  func.func @_sa_mlp_maxpool_kernel(%arg0: i32, %arg1: memref<256x16xbf16, #tpu.memory_space<vmem>>, %arg2: memref<256x1xf32, #tpu.memory_space<vmem>>, %arg3: memref<16x32xbf16, #tpu.memory_space<vmem>>, %arg4: memref<1x32xf32, #tpu.memory_space<vmem>>, %arg5: memref<32x32xbf16, #tpu.memory_space<vmem>>, %arg6: memref<1x32xf32, #tpu.memory_space<vmem>>, %arg7: memref<32x32xf32, #tpu.memory_space<vmem>>) attributes {dimension_semantics = [#tpu.dimension_semantics<parallel>], iteration_bounds = array<i64: 2>, scalar_prefetch = 0 : i64, scratch_operands = 0 : i64, tpu.core_type = #tpu.core_type<tc>, window_params = [{transform_indices = @transform_0, window_bounds = array<i64: 256, 16>}, {transform_indices = @transform_1, window_bounds = array<i64: 256, 1>}, {pipeline_mode = #tpu.pipeline_mode<synchronous>, transform_indices = @transform_2, window_bounds = array<i64: 16, 32>}, {pipeline_mode = #tpu.pipeline_mode<synchronous>, transform_indices = @transform_3, window_bounds = array<i64: 1, 32>}, {pipeline_mode = #tpu.pipeline_mode<synchronous>, transform_indices = @transform_4, window_bounds = array<i64: 32, 32>}, {pipeline_mode = #tpu.pipeline_mode<synchronous>, transform_indices = @transform_5, window_bounds = array<i64: 1, 32>}, {transform_indices = @transform_6, window_bounds = array<i64: 32, 32>}]} {
    %c0 = arith.constant 0 : index
    %c0_0 = arith.constant 0 : index
    %0 = vector.load %arg1[%c0, %c0_0] : memref<256x16xbf16, #tpu.memory_space<vmem>>, vector<256x16xbf16>
    %c0_1 = arith.constant 0 : index
    %c0_2 = arith.constant 0 : index
    %1 = vector.load %arg3[%c0_1, %c0_2] : memref<16x32xbf16, #tpu.memory_space<vmem>>, vector<16x32xbf16>
    %cst = arith.constant dense<0.000000e+00> : vector<256x32xf32>
    %2 = tpu.matmul %0, %1, %cst {dimension_numbers = #tpu.dot_dimension_numbers<[1], [0], [0], [1], [0, 0, 1, 1], [], []>} : vector<256x16xbf16>, vector<16x32xbf16>, vector<256x32xf32> -> vector<256x32xf32>
    %c0_3 = arith.constant 0 : index
    %c0_4 = arith.constant 0 : index
    %3 = vector.load %arg4[%c0_3, %c0_4] : memref<1x32xf32, #tpu.memory_space<vmem>>, vector<1x32xf32>
    %4 = vector.broadcast %3 : vector<1x32xf32> to vector<256x32xf32>
    %5 = arith.addf %2, %4 : vector<256x32xf32>
    %cst_5 = arith.constant 0.000000e+00 : f32
    %6 = vector.broadcast %cst_5 : f32 to vector<256x32xf32>
    %7 = arith.maximumf %5, %6 : vector<256x32xf32>
    %8 = arith.truncf %7 : vector<256x32xf32> to vector<256x32xbf16>
    %c0_6 = arith.constant 0 : index
    %c0_7 = arith.constant 0 : index
    %9 = vector.load %arg5[%c0_6, %c0_7] : memref<32x32xbf16, #tpu.memory_space<vmem>>, vector<32x32xbf16>
    %cst_8 = arith.constant dense<0.000000e+00> : vector<256x32xf32>
    %10 = tpu.matmul %8, %9, %cst_8 {dimension_numbers = #tpu.dot_dimension_numbers<[1], [0], [0], [1], [0, 0, 1, 1], [], []>} : vector<256x32xbf16>, vector<32x32xbf16>, vector<256x32xf32> -> vector<256x32xf32>
    %c0_9 = arith.constant 0 : index
    %c0_10 = arith.constant 0 : index
    %11 = vector.load %arg6[%c0_9, %c0_10] : memref<1x32xf32, #tpu.memory_space<vmem>>, vector<1x32xf32>
    %12 = vector.broadcast %11 : vector<1x32xf32> to vector<256x32xf32>
    %13 = arith.addf %10, %12 : vector<256x32xf32>
    %cst_11 = arith.constant 0.000000e+00 : f32
    %14 = vector.broadcast %cst_11 : f32 to vector<256x32xf32>
    %15 = arith.maximumf %13, %14 : vector<256x32xf32>
    %c0_12 = arith.constant 0 : index
    %c0_13 = arith.constant 0 : index
    %16 = vector.load %arg2[%c0_12, %c0_13] : memref<256x1xf32, #tpu.memory_space<vmem>>, vector<256x1xf32>
    %17 = vector.broadcast %16 : vector<256x1xf32> to vector<256x32xf32>
    %18 = arith.mulf %15, %17 : vector<256x32xf32>
    %19 = vector.shape_cast %18 : vector<256x32xf32> to vector<32x8x32xf32>
    %cst_14 = arith.constant dense<0xFF800000> : vector<32x32xf32>
    %20 = vector.multi_reduction <maximumf>, %19, %cst_14 [1] : vector<32x8x32xf32> to vector<32x32xf32>
    %c0_15 = arith.constant 0 : index
    %c0_16 = arith.constant 0 : index
    %21 = vector.load %arg7[%c0_15, %c0_16] : memref<32x32xf32, #tpu.memory_space<vmem>>, vector<32x32xf32>
    tpu.vector_store %arg7[%c0_15, %c0_16], %20 {strides = array<i32>} : memref<32x32xf32, #tpu.memory_space<vmem>>, vector<32x32xf32>,
    return
  }
  func.func @transform_0(%arg0: i32) -> (i32, i32) {
    %c0_i32 = arith.constant 0 : i32
    %c0_i32_0 = arith.constant 0 : i32
    return %arg0, %c0_i32 : i32, i32
  }
  func.func @transform_1(%arg0: i32) -> (i32, i32) {
    %c0_i32 = arith.constant 0 : i32
    %c0_i32_0 = arith.constant 0 : i32
    return %arg0, %c0_i32 : i32, i32
  }
  func.func @transform_2(%arg0: i32) -> (i32, i32) {
    %c0_i32 = arith.constant 0 : i32
    %c0_i32_0 = arith.constant 0 : i32
    %c0_i32_1 = arith.constant 0 : i32
    return %c0_i32, %c0_i32_0 : i32, i32
  }
  func.func @transform_3(%arg0: i32) -> (i32, i32) {
    %c0_i32 = arith.constant 0 : i32
    %c0_i32_0 = arith.constant 0 : i32
    %c0_i32_1 = arith.constant 0 : i32
    return %c0_i32, %c0_i32_0 : i32, i32
  }
  func.func @transform_4(%arg0: i32) -> (i32, i32) {
    %c0_i32 = arith.constant 0 : i32
    %c0_i32_0 = arith.constant 0 : i32
    %c0_i32_1 = arith.constant 0 : i32
    return %c0_i32, %c0_i32_0 : i32, i32
  }
  func.func @transform_5(%arg0: i32) -> (i32, i32) {
    %c0_i32 = arith.constant 0 : i32
    %c0_i32_0 = arith.constant 0 : i32
    %c0_i32_1 = arith.constant 0 : i32
    return %c0_i32, %c0_i32_0 : i32, i32
  }
  func.func @transform_6(%arg0: i32) -> (i32, i32) {
    %c0_i32 = arith.constant 0 : i32
    %c0_i32_0 = arith.constant 0 : i32
    return %arg0, %c0_i32 : i32, i32
  }
}

</mosaic_0001>

<llo_original>
// kernel: sa_module_forward.1
$region0: #{sa_module_forward.1}
  #allocation0 [shape = 'u32[]', space=smem, size = 0x4, offset = 0x4, fixed_abs, tag = 'smem constant byte address 0x4 - core index']
  #allocation1 [shape = 'u32[144,128]{1,0:T(1,128)}', space=vmem, size = 0x12000, scoped, tag = 'internal scratch']
  %s0 = inlined_call_operand.vmem [shape: bf16[512,16], index: 0, kind: input, shape index: {}]
  %s1 = inlined_call_operand.vmem [shape: f32[512,1], index: 1, kind: input, shape index: {}]
  %s2 = inlined_call_operand.vmem [shape: bf16[16,32], index: 2, kind: input, shape index: {}]
  %s3 = inlined_call_operand.vmem [shape: f32[1,32], index: 3, kind: input, shape index: {}]
  %s4 = inlined_call_operand.vmem [shape: bf16[32,32], index: 4, kind: input, shape index: {}]
  %s5 = inlined_call_operand.vmem [shape: f32[1,32], index: 5, kind: input, shape index: {}]
  %s6 = inlined_call_operand.hbm [shape: f32[64,32], index: 6, kind: output, shape index: {}]
  %s7 = sld [smem:[#allocation0]]
  $region57: #{sa_module_forward.1} parent=0
    _
  %s9 = ssub.s32 1, %s7
  %s10 = scalar_select 0, %s9, %s7
  $region1: #{sa_module_forward.1} parent=0
    #allocation2 [shape = 'u8[32768]{0}', space=vmem, size = 0x8000, scoped, tag = 'output window, operand 0']
    #allocation3 [shape = 's32[2]{0}', space=sflag, size = 0x8, scoped, tag = 'scoped memory for sa_module_forward.1']
    %11 = vsyncpa [#allocation3], 0
    %s12 = scalar_lea.sflag [#allocation3], 1
    %13 = vsyncpa %s12, 0
    loop: start=0, step=1, limit=4
    $region2: #{sa_module_forward.1} parent=1 // loop_pre_header
      _
    $region3: #{sa_module_forward.1} parent=1 // loop_header
      %s15 = sphi 0, %s19
      %p16 = scmp.ge.s32.totalorder %s15, 4
      %s25 = sphi 0, %s27
      %s28 = sphi 0, %s25
      %s29 = sphi 0, %s28
      %s45 = sphi 0, %s29
      %s51 = sphi 0, %s53
      %s54 = sphi 0, %s51
      %s55 = sphi 0, %s54
      %s71 = sphi 0, %s55
      %s75 = sphi 0, %s75
      %s77 = sphi 0, %s75
      %s78 = sphi 0, %s77
      %s92 = sphi 0, %s78
      %s96 = sphi 0, %s96
      %s98 = sphi 0, %s96
      %s99 = sphi 0, %s98
      %s113 = sphi 0, %s99
      %s117 = sphi 0, %s117
      %s119 = sphi 0, %s117
      %s120 = sphi 0, %s119
      %s134 = sphi 0, %s120
      %s138 = sphi 0, %s138
      %s140 = sphi 0, %s138
      %s141 = sphi 0, %s140
      %s155 = sphi 0, %s141
      %s161 = sphi 0, %s163
      %s164 = sphi 0, %s161
      %s165 = sphi 0, %s164
      %s181 = sphi 0, %s165
    $region4: #{sa_module_forward.1} parent=1 // loop_header_branch
      %18 = sbr.rel (%p16) target = $region8
    $region5: #{sa_module_forward.1} parent=1 // loop_body
      %s20 = ssub.s32 %s15, 1
      %s21 = ssub.s32 %s15, 2
      %s22 = sadd.s32 %s15, 1
      %s23 = ssub.s32 %s15, %s22
      %p24 = scmp.eq.s32.totalorder %s23, 0
      %s26 = sadd.s32 %s25, 1
      %s27 = scalar_select %p24, %s25, %s26
      %p30 = pneg %p24
      %p31 = scmp.eq.s32.totalorder %s15, 1
      %p32 = por %p30, %p31
      %p33 = scmp.ne.s32.totalorder %s25, %s28
      %p34 = scmp.eq.s32.totalorder %s15, 0
      %p35 = por %p33, %p34
      %p36 = scmp.ne.s32.totalorder %s25, %s28
      %p37 = scmp.eq.s32.totalorder %s20, 1
      %p38 = por %p36, %p37
      %p39 = scmp.ne.s32.totalorder %s28, %s29
      %p40 = scmp.eq.s32.totalorder %s20, 0
      %p41 = por %p39, %p40
      %p42 = scmp.ne.s32.totalorder %s28, %s29
      %p43 = scmp.eq.s32.totalorder %s21, 1
      %p44 = por %p42, %p43
      %p46 = scmp.ne.s32.totalorder %s29, %s45
      %p47 = scmp.eq.s32.totalorder %s21, 0
      %p48 = por %p46, %p47
      %s49 = ssub.s32 %s15, %s22
      %p50 = scmp.eq.s32.totalorder %s49, 0
      %s52 = sadd.s32 %s51, 1
      %s53 = scalar_select %p50, %s51, %s52
      %p56 = pneg %p50
      %p57 = scmp.eq.s32.totalorder %s15, 1
      %p58 = por %p56, %p57
      %p59 = scmp.ne.s32.totalorder %s51, %s54
      %p60 = scmp.eq.s32.totalorder %s15, 0
      %p61 = por %p59, %p60
      %p62 = scmp.ne.s32.totalorder %s51, %s54
      %p63 = scmp.eq.s32.totalorder %s20, 1
      %p64 = por %p62, %p63
      %p65 = scmp.ne.s32.totalorder %s54, %s55
      %p66 = scmp.eq.s32.totalorder %s20, 0
      %p67 = por %p65, %p66
      %p68 = scmp.ne.s32.totalorder %s54, %s55
      %p69 = scmp.eq.s32.totalorder %s21, 1
      %p70 = por %p68, %p69
      %p72 = scmp.ne.s32.totalorder %s55, %s71
      %p73 = scmp.eq.s32.totalorder %s21, 0
      %p74 = por %p72, %p73
      %s76 = sadd.s32 %s75, 1
      %p79 = scmp.eq.s32.totalorder %s15, 1
      %p80 = scmp.ne.s32.totalorder %s75, %s77
      %p81 = scmp.eq.s32.totalorder %s15, 0
      %p82 = por %p80, %p81
      %p83 = scmp.ne.s32.totalorder %s75, %s77
      %p84 = scmp.eq.s32.totalorder %s20, 1
      %p85 = por %p83, %p84
      %p86 = scmp.ne.s32.totalorder %s77, %s78
      %p87 = scmp.eq.s32.totalorder %s20, 0
      %p88 = por %p86, %p87
      %p89 = scmp.ne.s32.totalorder %s77, %s78
      %p90 = scmp.eq.s32.totalorder %s21, 1
      %p91 = por %p89, %p90
      %p93 = scmp.ne.s32.totalorder %s78, %s92
      %p94 = scmp.eq.s32.totalorder %s21, 0
      %p95 = por %p93, %p94
      %s97 = sadd.s32 %s96, 1
      %p100 = scmp.eq.s32.totalorder %s15, 1
      %p101 = scmp.ne.s32.totalorder %s96, %s98
      %p102 = scmp.eq.s32.totalorder %s15, 0
      %p103 = por %p101, %p102
      %p104 = scmp.ne.s32.totalorder %s96, %s98
      %p105 = scmp.eq.s32.totalorder %s20, 1
      %p106 = por %p104, %p105
      %p107 = scmp.ne.s32.totalorder %s98, %s99
      %p108 = scmp.eq.s32.totalorder %s20, 0
      %p109 = por %p107, %p108
      %p110 = scmp.ne.s32.totalorder %s98, %s99
      %p111 = scmp.eq.s32.totalorder %s21, 1
      %p112 = por %p110, %p111
      %p114 = scmp.ne.s32.totalorder %s99, %s113
      %p115 = scmp.eq.s32.totalorder %s21, 0
      %p116 = por %p114, %p115
      %s118 = sadd.s32 %s117, 1
      %p121 = scmp.eq.s32.totalorder %s15, 1
      %p122 = scmp.ne.s32.totalorder %s117, %s119
      %p123 = scmp.eq.s32.totalorder %s15, 0
      %p124 = por %p122, %p123
      %p125 = scmp.ne.s32.totalorder %s117, %s119
      %p126 = scmp.eq.s32.totalorder %s20, 1
      %p127 = por %p125, %p126
      %p128 = scmp.ne.s32.totalorder %s119, %s120
      %p129 = scmp.eq.s32.totalorder %s20, 0
      %p130 = por %p128, %p129
      %p131 = scmp.ne.s32.totalorder %s119, %s120
      %p132 = scmp.eq.s32.totalorder %s21, 1
      %p133 = por %p131, %p132
      %p135 = scmp.ne.s32.totalorder %s120, %s134
      %p136 = scmp.eq.s32.totalorder %s21, 0
      %p137 = por %p135, %p136
      %s139 = sadd.s32 %s138, 1
      %p142 = scmp.eq.s32.totalorder %s15, 1
      %p143 = scmp.ne.s32.totalorder %s138, %s140
      %p144 = scmp.eq.s32.totalorder %s15, 0
      %p145 = por %p143, %p144
      %p146 = scmp.ne.s32.totalorder %s138, %s140
      %p147 = scmp.eq.s32.totalorder %s20, 1
      %p148 = por %p146, %p147
      %p149 = scmp.ne.s32.totalorder %s140, %s141
      %p150 = scmp.eq.s32.totalorder %s20, 0
      %p151 = por %p149, %p150
      %p152 = scmp.ne.s32.totalorder %s140, %s141
      %p153 = scmp.eq.s32.totalorder %s21, 1
      %p154 = por %p152, %p153
      %p156 = scmp.ne.s32.totalorder %s141, %s155
      %p157 = scmp.eq.s32.totalorder %s21, 0
      %p158 = por %p156, %p157
      %s159 = ssub.s32 %s15, %s22
      %p160 = scmp.eq.s32.totalorder %s159, 0
      %s162 = sadd.s32 %s161, 1
      %s163 = scalar_select %p160, %s161, %s162
      %p166 = pneg %p160
      %p167 = scmp.eq.s32.totalorder %s15, 1
      %p168 = por %p166, %p167
      %p169 = scmp.ne.s32.totalorder %s161, %s164
      %p170 = scmp.eq.s32.totalorder %s15, 0
      %p171 = por %p169, %p170
      %p172 = scmp.ne.s32.totalorder %s161, %s164
      %p173 = scmp.eq.s32.totalorder %s20, 1
      %p174 = por %p172, %p173
      %p175 = scmp.ne.s32.totalorder %s164, %s165
      %p176 = scmp.eq.s32.totalorder %s20, 0
      %p177 = por %p175, %p176
      %p178 = scmp.ne.s32.totalorder %s164, %s165
      %p179 = scmp.eq.s32.totalorder %s21, 1
      %p180 = por %p178, %p179
      %p182 = scmp.ne.s32.totalorder %s165, %s181
      %p183 = scmp.eq.s32.totalorder %s21, 0
      %p184 = por %p182, %p183
      %p185 = scmp.le.s32.totalorder 1, %s15
      %p186 = scmp.lt.s32.totalorder %s15, 3
      %p187 = pnand %p185, %p186
      %p188 = pneg %p187
      // Predicated region
      $region9: #{sa_module_forward.1} parent=5 // pred_check
        _
      $region10: #{sa_module_forward.1} parent=5 // pred_check_branch
        %190 = sbr.rel (%p187) target = $region12
      $region11: #{sa_module_forward.1} parent=5 // pred_region
        %s191 = ssub.s32 %s15, 1
        // Predicated region
        $region13: #{sa_module_forward.1} parent=11 // pred_check
          %p192 = pneg %p88
        $region14: #{sa_module_forward.1} parent=11 // pred_check_branch
          %194 = sbr.rel (%p192) target = $region16
        $region15: #{sa_module_forward.1} parent=11 // pred_region
          _
        $region16: #{sa_module_forward.1} parent=11 // pred_fallthru
          _
        // Predicated region
        $region17: #{sa_module_forward.1} parent=11 // pred_check
          %p195 = pneg %p109
        $region18: #{sa_module_forward.1} parent=11 // pred_check_branch
          %197 = sbr.rel (%p195) target = $region20
        $region19: #{sa_module_forward.1} parent=11 // pred_region
          _
        $region20: #{sa_module_forward.1} parent=11 // pred_fallthru
          _
        // Predicated region
        $region21: #{sa_module_forward.1} parent=11 // pred_check
          %p198 = pneg %p130
        $region22: #{sa_module_forward.1} parent=11 // pred_check_branch
          %200 = sbr.rel (%p198) target = $region24
        $region23: #{sa_module_forward.1} parent=11 // pred_region
          _
        $region24: #{sa_module_forward.1} parent=11 // pred_fallthru
          _
        // Predicated region
        $region25: #{sa_module_forward.1} parent=11 // pred_check
          %p201 = pneg %p151
        $region26: #{sa_module_forward.1} parent=11 // pred_check_branch
          %203 = sbr.rel (%p201) target = $region28
        $region27: #{sa_module_forward.1} parent=11 // pred_region
          _
        $region28: #{sa_module_forward.1} parent=11 // pred_fallthru
          _
      $region12: #{sa_module_forward.1} parent=5 // pred_fallthru
        _
      %p204 = scmp.lt.s32.totalorder %s15, 2
      // Predicated region
      $region29: #{sa_module_forward.1} parent=5 // pred_check
        %p205 = pneg %p204
      $region30: #{sa_module_forward.1} parent=5 // pred_check_branch
        %207 = sbr.rel (%p205) target = $region32
      $region31: #{sa_module_forward.1} parent=5 // pred_region
        // Predicated region
        $region33: #{sa_module_forward.1} parent=31 // pred_check
          %p208 = pneg %p35
        $region34: #{sa_module_forward.1} parent=31 // pred_check_branch
          %210 = sbr.rel (%p208) target = $region36
        $region35: #{sa_module_forward.1} parent=31 // pred_region
          %s211 = smul.u32 32, %s15
          %p212 = scmp.lt.s32.totalorder %s211, 63
          %s213 = scalar_select %p212, %s211, 63
          %s214 = smul.addr %s213, 4
          %s215 = scalar_lea.vmem %s0, %s214
          %s216 = smul.u32 32, %s15
        $region36: #{sa_module_forward.1} parent=31 // pred_fallthru
          _
        // Predicated region
        $region37: #{sa_module_forward.1} parent=31 // pred_check
          %p217 = pneg %p61
        $region38: #{sa_module_forward.1} parent=31 // pred_check_branch
          %219 = sbr.rel (%p217) target = $region40
        $region39: #{sa_module_forward.1} parent=31 // pred_region
          %s220 = smul.u32 32, %s15
          %p221 = scmp.lt.s32.totalorder %s220, 63
          %s222 = scalar_select %p221, %s220, 63
          %s223 = smul.addr %s222, 8
          %s224 = scalar_lea.vmem %s1, %s223
          %s225 = smul.u32 32, %s15
        $region40: #{sa_module_forward.1} parent=31 // pred_fallthru
          _
      $region32: #{sa_module_forward.1} parent=5 // pred_fallthru
        _
      %p226 = scmp.le.s32.totalorder 1, %s15
      %p227 = scmp.lt.s32.totalorder %s15, 3
      %p228 = pnand %p226, %p227
      %p229 = pneg %p228
      // Predicated region
      $region41: #{sa_module_forward.1} parent=5 // pred_check
        _
      $region42: #{sa_module_forward.1} parent=5 // pred_check_branch
        %231 = sbr.rel (%p228) target = $region44
      $region43: #{sa_module_forward.1} parent=5 // pred_region
        %s232 = ssub.s32 %s15, 1
        %s233 = smul.u32 32, %s20
        %p234 = scmp.lt.s32.totalorder %s233, 63
        %s235 = scalar_select %p234, %s233, 63
        %s236 = smul.addr %s235, 4
        %s237 = scalar_lea.vmem %s0, %s236
        %p238 = pneg %p41
        %p239 = pneg %p38
        %s240 = smul.u32 32, %s20
        %p241 = scmp.lt.s32.totalorder %s240, 63
        %s242 = scalar_select %p241, %s240, 63
        %s243 = smul.addr %s242, 8
        %s244 = scalar_lea.vmem %s1, %s243
        %p245 = pneg %p67
        %p246 = pneg %p64
        %p247 = pneg %p88
        %p248 = pneg %p85
        %p249 = pneg %p109
        %p250 = pneg %p106
        %p251 = pneg %p130
        %p252 = pneg %p127
        %p253 = pneg %p151
        %p254 = pneg %p148
        %p255 = pneg %p177
        %p256 = pneg %p174
        %s257 = sand.u32 %s164, 1
        %s258 = scalar_lea.sflag [#allocation3], %s257
        %s259 = sand.u32 %s164, 1
        %s260 = smul.addr %s259, 32
        %s261 = scalar_lea.vmem [#allocation2], %s260
        %s262 = smul.u32 32, %s20
        %p263 = scmp.lt.s32.totalorder %s262, 63
        %s264 = scalar_select %p263, %s262, 63
        %s265 = smul.addr %s264, 4
        %s266 = scalar_lea.vmem %s0, %s265
        %s267 = smul.u32 32, %s20
        %s268 = smul.u32 32, %s20
        %p269 = scmp.lt.s32.totalorder %s268, 63
        %s270 = scalar_select %p269, %s268, 63
        %s271 = smul.addr %s270, 8
        %s272 = scalar_lea.vmem %s1, %s271
        %s273 = smul.u32 32, %s20
        %s274 = smul.u32 4, %s20
        %v276 = vld [vmem:[%s266] sm:$0xf]
        %v277 = vld [vmem:[%s266 + $0x4] sm:$0xf]
        %v278 = vld [vmem:[%s266 + $0x8] sm:$0xf]
        %v279 = vld [vmem:[%s266 + $0xc] sm:$0xf]
        %v280 = vld [vmem:[%s266 + $0x10] sm:$0xf]
        %v281 = vld [vmem:[%s266 + $0x14] sm:$0xf]
        %v282 = vld [vmem:[%s266 + $0x18] sm:$0xf]
        %v283 = vld [vmem:[%s266 + $0x1c] sm:$0xf]
        %v284 = vld [vmem:[%s266 + $0x20] sm:$0xf]
        %v285 = vld [vmem:[%s266 + $0x24] sm:$0xf]
        %v286 = vld [vmem:[%s266 + $0x28] sm:$0xf]
        %v287 = vld [vmem:[%s266 + $0x2c] sm:$0xf]
        %v288 = vld [vmem:[%s266 + $0x30] sm:$0xf]
        %v289 = vld [vmem:[%s266 + $0x34] sm:$0xf]
        %v290 = vld [vmem:[%s266 + $0x38] sm:$0xf]
        %v291 = vld [vmem:[%s266 + $0x3c] sm:$0xf]
        %v292 = vld [vmem:[%s266 + $0x40] sm:$0xf]
        %v293 = vld [vmem:[%s266 + $0x44] sm:$0xf]
        %v294 = vld [vmem:[%s266 + $0x48] sm:$0xf]
        %v295 = vld [vmem:[%s266 + $0x4c] sm:$0xf]
        %v296 = vld [vmem:[%s266 + $0x50] sm:$0xf]
        %v297 = vld [vmem:[%s266 + $0x54] sm:$0xf]
        %v298 = vld [vmem:[%s266 + $0x58] sm:$0xf]
        %v299 = vld [vmem:[%s266 + $0x5c] sm:$0xf]
        %v300 = vld [vmem:[%s266 + $0x60] sm:$0xf]
        %v301 = vld [vmem:[%s266 + $0x64] sm:$0xf]
        %v302 = vld [vmem:[%s266 + $0x68] sm:$0xf]
        %v303 = vld [vmem:[%s266 + $0x6c] sm:$0xf]
        %v304 = vld [vmem:[%s266 + $0x70] sm:$0xf]
        %v305 = vld [vmem:[%s266 + $0x74] sm:$0xf]
        %v306 = vld [vmem:[%s266 + $0x78] sm:$0xf]
        %v307 = vld [vmem:[%s266 + $0x7c] sm:$0xf]
        %v308 = vld [vmem:[%s2] sm:$0xf]
        %v309 = vld [vmem:[%s2 + $0x4] sm:$0xf]
        %v310 = vld [vmem:[%s3] sm:$0x1]
        %v312 = vlaneseq
        %v313 = vshrl.u32 %v312, 7
        %v314 = vsub.s32 0, %v313
        %v315 = vrot.slane %v310, %v314
        %v349 = vunpack.c.l.b16 %v276
        %v350 = vunpack.c.l.b16 %v277
        %v351 = vunpack.c.l.b16 %v278
        %v352 = vunpack.c.l.b16 %v279
        %v353 = vunpack.c.l.b16 %v280
        %v354 = vunpack.c.l.b16 %v281
        %v355 = vunpack.c.l.b16 %v282
        %v356 = vunpack.c.l.b16 %v283
        %v357 = vunpack.c.l.b16 %v284
        %v358 = vunpack.c.l.b16 %v285
        %v359 = vunpack.c.l.b16 %v286
        %v360 = vunpack.c.l.b16 %v287
        %v361 = vunpack.c.l.b16 %v288
        %v362 = vunpack.c.l.b16 %v289
        %v363 = vunpack.c.l.b16 %v290
        %v364 = vunpack.c.l.b16 %v291
        %v365 = vunpack.c.l.b16 %v292
        %v366 = vunpack.c.l.b16 %v293
        %v367 = vunpack.c.l.b16 %v294
        %v368 = vunpack.c.l.b16 %v295
        %v369 = vunpack.c.l.b16 %v296
        %v370 = vunpack.c.l.b16 %v297
        %v371 = vunpack.c.l.b16 %v298
        %v372 = vunpack.c.l.b16 %v299
        %v373 = vunpack.c.l.b16 %v300
        %v374 = vunpack.c.l.b16 %v301
        %v375 = vunpack.c.l.b16 %v302
        %v376 = vunpack.c.l.b16 %v303
        %v377 = vunpack.c.l.b16 %v304
        %v378 = vunpack.c.l.b16 %v305
        %v379 = vunpack.c.l.b16 %v306
        %v380 = vunpack.c.l.b16 %v307
        %v381 = vpack.c.b16 %v350, %v349
        %v382 = vpack.c.b16 %v352, %v351
        %v383 = vpack.c.b16 %v354, %v353
        %v384 = vpack.c.b16 %v356, %v355
        %v385 = vpack.c.b16 %v358, %v357
        %v386 = vpack.c.b16 %v360, %v359
        %v387 = vpack.c.b16 %v362, %v361
        %v388 = vpack.c.b16 %v364, %v363
        %v389 = vpack.c.b16 %v366, %v365
        %v390 = vpack.c.b16 %v368, %v367
        %v391 = vpack.c.b16 %v370, %v369
        %v392 = vpack.c.b16 %v372, %v371
        %v393 = vpack.c.b16 %v374, %v373
        %v394 = vpack.c.b16 %v376, %v375
        %v395 = vpack.c.b16 %v378, %v377
        %v396 = vpack.c.b16 %v380, %v379
        %v399 = vunpack.c.l.b16 %v308
        %v400 = vunpack.c.l.b16 %v309
        %v401 = vpack.c.b16 %v400, %v399
        %vm403 = vcmask 130048
        %v405 = vsel %vm403, %v381, 0
        %v408 = vsel %vm403, %v382, 0
        %v411 = vsel %vm403, %v383, 0
        %v414 = vsel %vm403, %v384, 0
        %v417 = vsel %vm403, %v385, 0
        %v420 = vsel %vm403, %v386, 0
        %v423 = vsel %vm403, %v387, 0
        %v426 = vsel %vm403, %v388, 0
        %v429 = vsel %vm403, %v389, 0
        %v432 = vsel %vm403, %v390, 0
        %v435 = vsel %vm403, %v391, 0
        %v438 = vsel %vm403, %v392, 0
        %v441 = vsel %vm403, %v393, 0
        %v444 = vsel %vm403, %v394, 0
        %v447 = vsel %vm403, %v395, 0
        %v450 = vsel %vm403, %v396, 0
        %452 = vmatprep.subr.bf16.mxu0 0
        %453 = vmatpush1.bf16.msra.mxu0 %v401
        %454 = vmatprep.subr.bf16.mxu0 0
        %455 = vmatpush1.bf16.msra.mxu0 0
        %456 = vmatprep.subr.bf16.mxu0 0
        %457 = vmatpush1.bf16.msra.mxu0 0
        %458 = vmatprep.subr.bf16.mxu0 0
        %459 = vmatpush1.bf16.msra.mxu0 0
        %460 = vmatprep.subr.bf16.mxu0 0
        %461 = vmatpush1.bf16.msra.mxu0 0
        %462 = vmatprep.subr.bf16.mxu0 0
        %463 = vmatpush1.bf16.msra.mxu0 0
        %464 = vmatprep.subr.bf16.mxu0 0
        %465 = vmatpush1.bf16.msra.mxu0 0
        %466 = vmatprep.subr.bf16.mxu0 0
        %467 = vmatpush1.bf16.msra.mxu0 0
        %468 = vmatprep.subr.bf16.mxu0 0
        %469 = vmatpush1.bf16.msra.mxu0 0
        %470 = vmatprep.subr.bf16.mxu0 0
        %471 = vmatpush1.bf16.msra.mxu0 0
        %472 = vmatprep.subr.bf16.mxu0 0
        %473 = vmatpush1.bf16.msra.mxu0 0
        %474 = vmatprep.subr.bf16.mxu0 0
        %475 = vmatpush1.bf16.msra.mxu0 0
        %476 = vmatprep.subr.bf16.mxu0 0
        %477 = vmatpush1.bf16.msra.mxu0 0
        %478 = vmatprep.subr.bf16.mxu0 0
        %479 = vmatpush1.bf16.msra.mxu0 0
        %480 = vmatprep.subr.bf16.mxu0 0
        %481 = vmatpush1.bf16.msra.mxu0 0
        %482 = vmatprep.subr.bf16.mxu0 0
        %483 = vmatpush1.bf16.msra.mxu0 0
        %484 = vmatprep.mubr.bf16.mxu0 0
        %485 = vmatmul.mubr.bf16.gmra.mrb[0].mxu0 %v405
        %v486 = vpop.f32.mrb[0].mxu0
        %v487 = vadd.f32 %v315, %v486
        %v488 = vpop.f32.mrb[0].mxu0
        %v489 = vpop.f32.mrb[0].mxu0
        %v490 = vadd.f32 %v315, %v489
        %v491 = vpop.f32.mrb[0].mxu0
        %492 = vmatprep.mubr.bf16.mxu0 0
        %493 = vmatmul.mubr.bf16.gmra.mrb[0].mxu0 %v408
        %v494 = vpop.f32.mrb[0].mxu0
        %v495 = vadd.f32 %v315, %v494
        %v496 = vpop.f32.mrb[0].mxu0
        %v497 = vpop.f32.mrb[0].mxu0
        %v498 = vadd.f32 %v315, %v497
        %v499 = vpop.f32.mrb[0].mxu0
        %500 = vmatprep.mubr.bf16.mxu0 0
        %501 = vmatmul.mubr.bf16.gmra.mrb[0].mxu0 %v411
        %v502 = vpop.f32.mrb[0].mxu0
        %v503 = vadd.f32 %v315, %v502
        %v504 = vpop.f32.mrb[0].mxu0
        %v505 = vpop.f32.mrb[0].mxu0
        %v506 = vadd.f32 %v315, %v505
        %v507 = vpop.f32.mrb[0].mxu0
        %508 = vmatprep.mubr.bf16.mxu0 0
        %509 = vmatmul.mubr.bf16.gmra.mrb[0].mxu0 %v414
        %v510 = vpop.f32.mrb[0].mxu0
        %v511 = vadd.f32 %v315, %v510
        %v512 = vpop.f32.mrb[0].mxu0
        %v513 = vpop.f32.mrb[0].mxu0
        %v514 = vadd.f32 %v315, %v513
        %v515 = vpop.f32.mrb[0].mxu0
        %516 = vmatprep.mubr.bf16.mxu0 0
        %517 = vmatmul.mubr.bf16.gmra.mrb[0].mxu0 %v417
        %v518 = vpop.f32.mrb[0].mxu0
        %v519 = vadd.f32 %v315, %v518
        %v520 = vpop.f32.mrb[0].mxu0
        %v521 = vpop.f32.mrb[0].mxu0
        %v522 = vadd.f32 %v315, %v521
        %v523 = vpop.f32.mrb[0].mxu0
        %524 = vmatprep.mubr.bf16.mxu0 0
        %525 = vmatmul.mubr.bf16.gmra.mrb[0].mxu0 %v420
        %v526 = vpop.f32.mrb[0].mxu0
        %v527 = vadd.f32 %v315, %v526
        %v528 = vpop.f32.mrb[0].mxu0
        %v529 = vpop.f32.mrb[0].mxu0
        %v530 = vadd.f32 %v315, %v529
        %v531 = vpop.f32.mrb[0].mxu0
        %532 = vmatprep.mubr.bf16.mxu0 0
        %533 = vmatmul.mubr.bf16.gmra.mrb[0].mxu0 %v423
        %v534 = vpop.f32.mrb[0].mxu0
        %v535 = vadd.f32 %v315, %v534
        %v536 = vpop.f32.mrb[0].mxu0
        %v537 = vpop.f32.mrb[0].mxu0
        %v538 = vadd.f32 %v315, %v537
        %v539 = vpop.f32.mrb[0].mxu0
        %540 = vmatprep.mubr.bf16.mxu0 0
        %541 = vmatmul.mubr.bf16.gmra.mrb[0].mxu0 %v426
        %v542 = vpop.f32.mrb[0].mxu0
        %v543 = vadd.f32 %v315, %v542
        %v544 = vpop.f32.mrb[0].mxu0
        %v545 = vpop.f32.mrb[0].mxu0
        %v546 = vadd.f32 %v315, %v545
        %v547 = vpop.f32.mrb[0].mxu0
        %548 = vmatprep.mubr.bf16.mxu0 0
        %549 = vmatmul.mubr.bf16.gmra.mrb[0].mxu0 %v429
        %v550 = vpop.f32.mrb[0].mxu0
        %v551 = vadd.f32 %v315, %v550
        %v552 = vpop.f32.mrb[0].mxu0
        %v553 = vpop.f32.mrb[0].mxu0
        %v554 = vadd.f32 %v315, %v553
        %v555 = vpop.f32.mrb[0].mxu0
        %556 = vmatprep.mubr.bf16.mxu0 0
        %557 = vmatmul.mubr.bf16.gmra.mrb[0].mxu0 %v432
        %v558 = vpop.f32.mrb[0].mxu0
        %v559 = vadd.f32 %v315, %v558
        %v560 = vpop.f32.mrb[0].mxu0
        %v561 = vpop.f32.mrb[0].mxu0
        %v562 = vadd.f32 %v315, %v561
        %v563 = vpop.f32.mrb[0].mxu0
        %564 = vmatprep.mubr.bf16.mxu0 0
        %565 = vmatmul.mubr.bf16.gmra.mrb[0].mxu0 %v435
        %v566 = vpop.f32.mrb[0].mxu0
        %v567 = vadd.f32 %v315, %v566
        %v568 = vpop.f32.mrb[0].mxu0
        %v569 = vpop.f32.mrb[0].mxu0
        %v570 = vadd.f32 %v315, %v569
        %v571 = vpop.f32.mrb[0].mxu0
        %572 = vmatprep.mubr.bf16.mxu0 0
        %573 = vmatmul.mubr.bf16.gmra.mrb[0].mxu0 %v438
        %v574 = vpop.f32.mrb[0].mxu0
        %v575 = vadd.f32 %v315, %v574
        %v576 = vpop.f32.mrb[0].mxu0
        %v577 = vpop.f32.mrb[0].mxu0
        %v578 = vadd.f32 %v315, %v577
        %v579 = vpop.f32.mrb[0].mxu0
        %580 = vmatprep.mubr.bf16.mxu0 0
        %581 = vmatmul.mubr.bf16.gmra.mrb[0].mxu0 %v441
        %v582 = vpop.f32.mrb[0].mxu0
        %v583 = vadd.f32 %v315, %v582
        %v584 = vpop.f32.mrb[0].mxu0
        %v585 = vpop.f32.mrb[0].mxu0
        %v586 = vadd.f32 %v315, %v585
        %v587 = vpop.f32.mrb[0].mxu0
        %588 = vmatprep.mubr.bf16.mxu0 0
        %589 = vmatmul.mubr.bf16.gmra.mrb[0].mxu0 %v444
        %v590 = vpop.f32.mrb[0].mxu0
        %v591 = vadd.f32 %v315, %v590
        %v592 = vpop.f32.mrb[0].mxu0
        %v593 = vpop.f32.mrb[0].mxu0
        %v594 = vadd.f32 %v315, %v593
        %v595 = vpop.f32.mrb[0].mxu0
        %596 = vmatprep.mubr.bf16.mxu0 0
        %597 = vmatmul.mubr.bf16.gmra.mrb[0].mxu0 %v447
        %v598 = vpop.f32.mrb[0].mxu0
        %v599 = vadd.f32 %v315, %v598
        %v600 = vpop.f32.mrb[0].mxu0
        %v601 = vpop.f32.mrb[0].mxu0
        %v602 = vadd.f32 %v315, %v601
        %v603 = vpop.f32.mrb[0].mxu0
        %604 = vmatprep.mubr.bf16.mxu0 0
        %605 = vmatmul.mubr.bf16.gmra.mrb[0].mxu0 %v450
        %v606 = vpop.f32.mrb[0].mxu0
        %v607 = vadd.f32 %v315, %v606
        %v608 = vpop.f32.mrb[0].mxu0
        %v609 = vpop.f32.mrb[0].mxu0
        %v610 = vadd.f32 %v315, %v609
        %v611 = vpop.f32.mrb[0].mxu0
        %612 = vdwg.mxu0
        %v613 = vmax.f32 %v487, 0.0
        %v614 = vmax.f32 %v490, 0.0
        %v615 = vmax.f32 %v495, 0.0
        %v616 = vmax.f32 %v498, 0.0
        %v617 = vmax.f32 %v503, 0.0
        %v618 = vmax.f32 %v506, 0.0
        %v619 = vmax.f32 %v511, 0.0
        %v620 = vmax.f32 %v514, 0.0
        %v621 = vmax.f32 %v519, 0.0
        %v622 = vmax.f32 %v522, 0.0
        %v623 = vmax.f32 %v527, 0.0
        %v624 = vmax.f32 %v530, 0.0
        %v625 = vmax.f32 %v535, 0.0
        %v626 = vmax.f32 %v538, 0.0
        %v627 = vmax.f32 %v543, 0.0
        %v628 = vmax.f32 %v546, 0.0
        %v629 = vmax.f32 %v551, 0.0
        %v630 = vmax.f32 %v554, 0.0
        %v631 = vmax.f32 %v559, 0.0
        %v632 = vmax.f32 %v562, 0.0
        %v633 = vmax.f32 %v567, 0.0
        %v634 = vmax.f32 %v570, 0.0
        %v635 = vmax.f32 %v575, 0.0
        %v636 = vmax.f32 %v578, 0.0
        %v637 = vmax.f32 %v583, 0.0
        %v638 = vmax.f32 %v586, 0.0
        %v639 = vmax.f32 %v591, 0.0
        %v640 = vmax.f32 %v594, 0.0
        %v641 = vmax.f32 %v599, 0.0
        %v642 = vmax.f32 %v602, 0.0
        %v643 = vmax.f32 %v607, 0.0
        %v644 = vmax.f32 %v610, 0.0
        %v645 = vpack.c.bf16 %v614, %v613
        %v646 = vpack.c.bf16 %v616, %v615
        %v647 = vpack.c.bf16 %v618, %v617
        %v648 = vpack.c.bf16 %v620, %v619
        %v649 = vpack.c.bf16 %v622, %v621
        %v650 = vpack.c.bf16 %v624, %v623
        %v651 = vpack.c.bf16 %v626, %v625
        %v652 = vpack.c.bf16 %v628, %v627
        %v653 = vpack.c.bf16 %v630, %v629
        %v654 = vpack.c.bf16 %v632, %v631
        %v655 = vpack.c.bf16 %v634, %v633
        %v656 = vpack.c.bf16 %v636, %v635
        %v657 = vpack.c.bf16 %v638, %v637
        %v658 = vpack.c.bf16 %v640, %v639
        %v659 = vpack.c.bf16 %v642, %v641
        %v660 = vpack.c.bf16 %v644, %v643
        %v661 = vld [vmem:[%s4] sm:$0xf]
        %v662 = vld [vmem:[%s4 + $0x4] sm:$0xf]
        %v663 = vld [vmem:[%s4 + $0x8] sm:$0xf]
        %v664 = vld [vmem:[%s4 + $0xc] sm:$0xf]
        %v665 = vld [vmem:[%s5] sm:$0x1]
        %v667 = vlaneseq
        %v668 = vshrl.u32 %v667, 7
        %v669 = vsub.s32 0, %v668
        %v670 = vrot.slane %v665, %v669
        %v676 = vunpack.c.l.b16 %v661
        %v677 = vunpack.c.l.b16 %v662
        %v678 = vunpack.c.l.b16 %v663
        %v679 = vunpack.c.l.b16 %v664
        %v680 = vpack.c.b16 %v677, %v676
        %v681 = vpack.c.b16 %v679, %v678
        %vm684 = vcmask 261120
        %v686 = vsel %vm684, %v645, 0
        %v689 = vsel %vm684, %v646, 0
        %v692 = vsel %vm684, %v647, 0
        %v695 = vsel %vm684, %v648, 0
        %v698 = vsel %vm684, %v649, 0
        %v701 = vsel %vm684, %v650, 0
        %v704 = vsel %vm684, %v651, 0
        %v707 = vsel %vm684, %v652, 0
        %v710 = vsel %vm684, %v653, 0
        %v713 = vsel %vm684, %v654, 0
        %v716 = vsel %vm684, %v655, 0
        %v719 = vsel %vm684, %v656, 0
        %v722 = vsel %vm684, %v657, 0
        %v725 = vsel %vm684, %v658, 0
        %v728 = vsel %vm684, %v659, 0
        %v731 = vsel %vm684, %v660, 0
        %733 = vmatprep.subr.bf16.mxu0 0
        %734 = vmatpush1.bf16.msra.mxu0 %v680
        %735 = vmatprep.subr.bf16.mxu0 0
        %736 = vmatpush1.bf16.msra.mxu0 %v681
        %737 = vmatprep.subr.bf16.mxu0 0
        %738 = vmatpush1.bf16.msra.mxu0 0
        %739 = vmatprep.subr.bf16.mxu0 0
        %740 = vmatpush1.bf16.msra.mxu0 0
        %741 = vmatprep.subr.bf16.mxu0 0
        %742 = vmatpush1.bf16.msra.mxu0 0
        %743 = vmatprep.subr.bf16.mxu0 0
        %744 = vmatpush1.bf16.msra.mxu0 0
        %745 = vmatprep.subr.bf16.mxu0 0
        %746 = vmatpush1.bf16.msra.mxu0 0
        %747 = vmatprep.subr.bf16.mxu0 0
        %748 = vmatpush1.bf16.msra.mxu0 0
        %749 = vmatprep.subr.bf16.mxu0 0
        %750 = vmatpush1.bf16.msra.mxu0 0
        %751 = vmatprep.subr.bf16.mxu0 0
        %752 = vmatpush1.bf16.msra.mxu0 0
        %753 = vmatprep.subr.bf16.mxu0 0
        %754 = vmatpush1.bf16.msra.mxu0 0
        %755 = vmatprep.subr.bf16.mxu0 0
        %756 = vmatpush1.bf16.msra.mxu0 0
        %757 = vmatprep.subr.bf16.mxu0 0
        %758 = vmatpush1.bf16.msra.mxu0 0
        %759 = vmatprep.subr.bf16.mxu0 0
        %760 = vmatpush1.bf16.msra.mxu0 0
        %761 = vmatprep.subr.bf16.mxu0 0
        %762 = vmatpush1.bf16.msra.mxu0 0
        %763 = vmatprep.subr.bf16.mxu0 0
        %764 = vmatpush1.bf16.msra.mxu0 0
        %765 = vmatprep.mubr.bf16.mxu0 0
        %766 = vmatmul.mubr.bf16.gmra.mrb[0].mxu0 %v686
        %v767 = vpop.f32.mrb[0].mxu0
        %v768 = vadd.f32 %v670, %v767
        %v769 = vpop.f32.mrb[0].mxu0
        %v770 = vpop.f32.mrb[0].mxu0
        %v771 = vadd.f32 %v670, %v770
        %v772 = vpop.f32.mrb[0].mxu0
        %773 = vmatprep.mubr.bf16.mxu0 0
        %774 = vmatmul.mubr.bf16.gmra.mrb[0].mxu0 %v689
        %v775 = vpop.f32.mrb[0].mxu0
        %v776 = vadd.f32 %v670, %v775
        %v777 = vpop.f32.mrb[0].mxu0
        %v778 = vpop.f32.mrb[0].mxu0
        %v779 = vadd.f32 %v670, %v778
        %v780 = vpop.f32.mrb[0].mxu0
        %781 = vmatprep.mubr.bf16.mxu0 0
        %782 = vmatmul.mubr.bf16.gmra.mrb[0].mxu0 %v692
        %v783 = vpop.f32.mrb[0].mxu0
        %v784 = vadd.f32 %v670, %v783
        %v785 = vpop.f32.mrb[0].mxu0
        %v786 = vpop.f32.mrb[0].mxu0
        %v787 = vadd.f32 %v670, %v786
        %v788 = vpop.f32.mrb[0].mxu0
        %789 = vmatprep.mubr.bf16.mxu0 0
        %790 = vmatmul.mubr.bf16.gmra.mrb[0].mxu0 %v695
        %v791 = vpop.f32.mrb[0].mxu0
        %v792 = vadd.f32 %v670, %v791
        %v793 = vpop.f32.mrb[0].mxu0
        %v794 = vpop.f32.mrb[0].mxu0
        %v795 = vadd.f32 %v670, %v794
        %v796 = vpop.f32.mrb[0].mxu0
        %797 = vmatprep.mubr.bf16.mxu0 0
        %798 = vmatmul.mubr.bf16.gmra.mrb[0].mxu0 %v698
        %v799 = vpop.f32.mrb[0].mxu0
        %v800 = vadd.f32 %v670, %v799
        %v801 = vpop.f32.mrb[0].mxu0
        %v802 = vpop.f32.mrb[0].mxu0
        %v803 = vadd.f32 %v670, %v802
        %v804 = vpop.f32.mrb[0].mxu0
        %805 = vmatprep.mubr.bf16.mxu0 0
        %806 = vmatmul.mubr.bf16.gmra.mrb[0].mxu0 %v701
        %v807 = vpop.f32.mrb[0].mxu0
        %v808 = vadd.f32 %v670, %v807
        %v809 = vpop.f32.mrb[0].mxu0
        %v810 = vpop.f32.mrb[0].mxu0
        %v811 = vadd.f32 %v670, %v810
        %v812 = vpop.f32.mrb[0].mxu0
        %813 = vmatprep.mubr.bf16.mxu0 0
        %814 = vmatmul.mubr.bf16.gmra.mrb[0].mxu0 %v704
        %v815 = vpop.f32.mrb[0].mxu0
        %v816 = vadd.f32 %v670, %v815
        %v817 = vpop.f32.mrb[0].mxu0
        %v818 = vpop.f32.mrb[0].mxu0
        %v819 = vadd.f32 %v670, %v818
        %v820 = vpop.f32.mrb[0].mxu0
        %821 = vmatprep.mubr.bf16.mxu0 0
        %822 = vmatmul.mubr.bf16.gmra.mrb[0].mxu0 %v707
        %v823 = vpop.f32.mrb[0].mxu0
        %v824 = vadd.f32 %v670, %v823
        %v825 = vpop.f32.mrb[0].mxu0
        %v826 = vpop.f32.mrb[0].mxu0
        %v827 = vadd.f32 %v670, %v826
        %v828 = vpop.f32.mrb[0].mxu0
        %829 = vmatprep.mubr.bf16.mxu0 0
        %830 = vmatmul.mubr.bf16.gmra.mrb[0].mxu0 %v710
        %v831 = vpop.f32.mrb[0].mxu0
        %v832 = vadd.f32 %v670, %v831
        %v833 = vpop.f32.mrb[0].mxu0
        %v834 = vpop.f32.mrb[0].mxu0
        %v835 = vadd.f32 %v670, %v834
        %v836 = vpop.f32.mrb[0].mxu0
        %837 = vmatprep.mubr.bf16.mxu0 0
        %838 = vmatmul.mubr.bf16.gmra.mrb[0].mxu0 %v713
        %v839 = vpop.f32.mrb[0].mxu0
        %v840 = vadd.f32 %v670, %v839
        %v841 = vpop.f32.mrb[0].mxu0
        %v842 = vpop.f32.mrb[0].mxu0
        %v843 = vadd.f32 %v670, %v842
        %v844 = vpop.f32.mrb[0].mxu0
        %845 = vmatprep.mubr.bf16.mxu0 0
        %846 = vmatmul.mubr.bf16.gmra.mrb[0].mxu0 %v716
        %v847 = vpop.f32.mrb[0].mxu0
        %v848 = vadd.f32 %v670, %v847
        %v849 = vpop.f32.mrb[0].mxu0
        %v850 = vpop.f32.mrb[0].mxu0
        %v851 = vadd.f32 %v670, %v850
        %v852 = vpop.f32.mrb[0].mxu0
        %853 = vmatprep.mubr.bf16.mxu0 0
        %854 = vmatmul.mubr.bf16.gmra.mrb[0].mxu0 %v719
        %v855 = vpop.f32.mrb[0].mxu0
        %v856 = vadd.f32 %v670, %v855
        %v857 = vpop.f32.mrb[0].mxu0
        %v858 = vpop.f32.mrb[0].mxu0
        %v859 = vadd.f32 %v670, %v858
        %v860 = vpop.f32.mrb[0].mxu0
        %861 = vmatprep.mubr.bf16.mxu0 0
        %862 = vmatmul.mubr.bf16.gmra.mrb[0].mxu0 %v722
        %v863 = vpop.f32.mrb[0].mxu0
        %v864 = vadd.f32 %v670, %v863
        %v865 = vpop.f32.mrb[0].mxu0
        %v866 = vpop.f32.mrb[0].mxu0
        %v867 = vadd.f32 %v670, %v866
        %v868 = vpop.f32.mrb[0].mxu0
        %869 = vmatprep.mubr.bf16.mxu0 0
        %870 = vmatmul.mubr.bf16.gmra.mrb[0].mxu0 %v725
        %v871 = vpop.f32.mrb[0].mxu0
        %v872 = vadd.f32 %v670, %v871
        %v873 = vpop.f32.mrb[0].mxu0
        %v874 = vpop.f32.mrb[0].mxu0
        %v875 = vadd.f32 %v670, %v874
        %v876 = vpop.f32.mrb[0].mxu0
        %877 = vmatprep.mubr.bf16.mxu0 0
        %878 = vmatmul.mubr.bf16.gmra.mrb[0].mxu0 %v728
        %v879 = vpop.f32.mrb[0].mxu0
        %v880 = vadd.f32 %v670, %v879
        %v881 = vpop.f32.mrb[0].mxu0
        %v882 = vpop.f32.mrb[0].mxu0
        %v883 = vadd.f32 %v670, %v882
        %v884 = vpop.f32.mrb[0].mxu0
        %885 = vmatprep.mubr.bf16.mxu0 0
        %886 = vmatmul.mubr.bf16.gmra.mrb[0].mxu0 %v731
        %v887 = vpop.f32.mrb[0].mxu0
        %v888 = vadd.f32 %v670, %v887
        %v889 = vpop.f32.mrb[0].mxu0
        %v890 = vpop.f32.mrb[0].mxu0
        %v891 = vadd.f32 %v670, %v890
        %v892 = vpop.f32.mrb[0].mxu0
        %893 = vdwg.mxu0
        %v894 = vmax.f32 %v768, 0.0
        %v895 = vmax.f32 %v771, 0.0
        %v896 = vmax.f32 %v776, 0.0
        %v897 = vmax.f32 %v779, 0.0
        %v898 = vmax.f32 %v784, 0.0
        %v899 = vmax.f32 %v787, 0.0
        %v900 = vmax.f32 %v792, 0.0
        %v901 = vmax.f32 %v795, 0.0
        %v902 = vmax.f32 %v800, 0.0
        %v903 = vmax.f32 %v803, 0.0
        %v904 = vmax.f32 %v808, 0.0
        %v905 = vmax.f32 %v811, 0.0
        %v906 = vmax.f32 %v816, 0.0
        %v907 = vmax.f32 %v819, 0.0
        %v908 = vmax.f32 %v824, 0.0
        %v909 = vmax.f32 %v827, 0.0
        %v910 = vmax.f32 %v832, 0.0
        %v911 = vmax.f32 %v835, 0.0
        %v912 = vmax.f32 %v840, 0.0
        %v913 = vmax.f32 %v843, 0.0
        %v914 = vmax.f32 %v848, 0.0
        %v915 = vmax.f32 %v851, 0.0
        %v916 = vmax.f32 %v856, 0.0
        %v917 = vmax.f32 %v859, 0.0
        %v918 = vmax.f32 %v864, 0.0
        %v919 = vmax.f32 %v867, 0.0
        %v920 = vmax.f32 %v872, 0.0
        %v921 = vmax.f32 %v875, 0.0
        %v922 = vmax.f32 %v880, 0.0
        %v923 = vmax.f32 %v883, 0.0
        %v924 = vmax.f32 %v888, 0.0
        %v925 = vmax.f32 %v891, 0.0
        %v926 = vld [vmem:[%s272] sm:$0xff]
        %v927 = vld [vmem:[%s272 + $0x8] sm:$0xff]
        %v928 = vld [vmem:[%s272 + $0x10] sm:$0xff]
        %v929 = vld [vmem:[%s272 + $0x18] sm:$0xff]
        %v930 = vld [vmem:[%s272 + $0x20] sm:$0xff]
        %v931 = vld [vmem:[%s272 + $0x28] sm:$0xff]
        %v932 = vld [vmem:[%s272 + $0x30] sm:$0xff]
        %v933 = vld [vmem:[%s272 + $0x38] sm:$0xff]
        %v934 = vld [vmem:[%s272 + $0x40] sm:$0xff]
        %v935 = vld [vmem:[%s272 + $0x48] sm:$0xff]
        %v936 = vld [vmem:[%s272 + $0x50] sm:$0xff]
        %v937 = vld [vmem:[%s272 + $0x58] sm:$0xff]
        %v938 = vld [vmem:[%s272 + $0x60] sm:$0xff]
        %v939 = vld [vmem:[%s272 + $0x68] sm:$0xff]
        %v940 = vld [vmem:[%s272 + $0x70] sm:$0xff]
        %v941 = vld [vmem:[%s272 + $0x78] sm:$0xff]
        %v942 = vld [vmem:[%s272 + $0x80] sm:$0xff]
        %v943 = vld [vmem:[%s272 + $0x88] sm:$0xff]
        %v944 = vld [vmem:[%s272 + $0x90] sm:$0xff]
        %v945 = vld [vmem:[%s272 + $0x98] sm:$0xff]
        %v946 = vld [vmem:[%s272 + $0xa0] sm:$0xff]
        %v947 = vld [vmem:[%s272 + $0xa8] sm:$0xff]
        %v948 = vld [vmem:[%s272 + $0xb0] sm:$0xff]
        %v949 = vld [vmem:[%s272 + $0xb8] sm:$0xff]
        %v950 = vld [vmem:[%s272 + $0xc0] sm:$0xff]
        %v951 = vld [vmem:[%s272 + $0xc8] sm:$0xff]
        %v952 = vld [vmem:[%s272 + $0xd0] sm:$0xff]
        %v953 = vld [vmem:[%s272 + $0xd8] sm:$0xff]
        %v954 = vld [vmem:[%s272 + $0xe0] sm:$0xff]
        %v955 = vld [vmem:[%s272 + $0xe8] sm:$0xff]
        %v956 = vld [vmem:[%s272 + $0xf0] sm:$0xff]
        %v957 = vld [vmem:[%s272 + $0xf8] sm:$0xff]
        %959 = vset.pattern.permute.xlu0 0
        %960 = vperm.xlu0 %959, %v926
        %v961 = vpop.permute.xlu0 %960
        %964 = vset.pattern.permute.xlu0 0
        %965 = vperm.xlu0 %964, %v927
        %v966 = vpop.permute.xlu0 %965
        %969 = vset.pattern.permute.xlu0 0
        %970 = vperm.xlu0 %969, %v928
        %v971 = vpop.permute.xlu0 %970
        %974 = vset.pattern.permute.xlu0 0
        %975 = vperm.xlu0 %974, %v929
        %v976 = vpop.permute.xlu0 %975
        %979 = vset.pattern.permute.xlu0 0
        %980 = vperm.xlu0 %979, %v930
        %v981 = vpop.permute.xlu0 %980
        %984 = vset.pattern.permute.xlu0 0
        %985 = vperm.xlu0 %984, %v931
        %v986 = vpop.permute.xlu0 %985
        %989 = vset.pattern.permute.xlu0 0
        %990 = vperm.xlu0 %989, %v932
        %v991 = vpop.permute.xlu0 %990
        %994 = vset.pattern.permute.xlu0 0
        %995 = vperm.xlu0 %994, %v933
        %v996 = vpop.permute.xlu0 %995
        %999 = vset.pattern.permute.xlu0 0
        %1000 = vperm.xlu0 %999, %v934
        %v1001 = vpop.permute.xlu0 %1000
        %1004 = vset.pattern.permute.xlu0 0
        %1005 = vperm.xlu0 %1004, %v935
        %v1006 = vpop.permute.xlu0 %1005
        %1009 = vset.pattern.permute.xlu0 0
        %1010 = vperm.xlu0 %1009, %v936
        %v1011 = vpop.permute.xlu0 %1010
        %1014 = vset.pattern.permute.xlu0 0
        %1015 = vperm.xlu0 %1014, %v937
        %v1016 = vpop.permute.xlu0 %1015
        %1019 = vset.pattern.permute.xlu0 0
        %1020 = vperm.xlu0 %1019, %v938
        %v1021 = vpop.permute.xlu0 %1020
        %1024 = vset.pattern.permute.xlu0 0
        %1025 = vperm.xlu0 %1024, %v939
        %v1026 = vpop.permute.xlu0 %1025
        %1029 = vset.pattern.permute.xlu0 0
        %1030 = vperm.xlu0 %1029, %v940
        %v1031 = vpop.permute.xlu0 %1030
        %1034 = vset.pattern.permute.xlu0 0
        %1035 = vperm.xlu0 %1034, %v941
        %v1036 = vpop.permute.xlu0 %1035
        %1039 = vset.pattern.permute.xlu0 0
        %1040 = vperm.xlu0 %1039, %v942
        %v1041 = vpop.permute.xlu0 %1040
        %1044 = vset.pattern.permute.xlu0 0
        %1045 = vperm.xlu0 %1044, %v943
        %v1046 = vpop.permute.xlu0 %1045
        %1049 = vset.pattern.permute.xlu0 0
        %1050 = vperm.xlu0 %1049, %v944
        %v1051 = vpop.permute.xlu0 %1050
        %1054 = vset.pattern.permute.xlu0 0
        %1055 = vperm.xlu0 %1054, %v945
        %v1056 = vpop.permute.xlu0 %1055
        %1059 = vset.pattern.permute.xlu0 0
        %1060 = vperm.xlu0 %1059, %v946
        %v1061 = vpop.permute.xlu0 %1060
        %1064 = vset.pattern.permute.xlu0 0
        %1065 = vperm.xlu0 %1064, %v947
        %v1066 = vpop.permute.xlu0 %1065
        %1069 = vset.pattern.permute.xlu0 0
        %1070 = vperm.xlu0 %1069, %v948
        %v1071 = vpop.permute.xlu0 %1070
        %1074 = vset.pattern.permute.xlu0 0
        %1075 = vperm.xlu0 %1074, %v949
        %v1076 = vpop.permute.xlu0 %1075
        %1079 = vset.pattern.permute.xlu0 0
        %1080 = vperm.xlu0 %1079, %v950
        %v1081 = vpop.permute.xlu0 %1080
        %1084 = vset.pattern.permute.xlu0 0
        %1085 = vperm.xlu0 %1084, %v951
        %v1086 = vpop.permute.xlu0 %1085
        %1089 = vset.pattern.permute.xlu0 0
        %1090 = vperm.xlu0 %1089, %v952
        %v1091 = vpop.permute.xlu0 %1090
        %1094 = vset.pattern.permute.xlu0 0
        %1095 = vperm.xlu0 %1094, %v953
        %v1096 = vpop.permute.xlu0 %1095
        %1099 = vset.pattern.permute.xlu0 0
        %1100 = vperm.xlu0 %1099, %v954
        %v1101 = vpop.permute.xlu0 %1100
        %1104 = vset.pattern.permute.xlu0 0
        %1105 = vperm.xlu0 %1104, %v955
        %v1106 = vpop.permute.xlu0 %1105
        %1109 = vset.pattern.permute.xlu0 0
        %1110 = vperm.xlu0 %1109, %v956
        %v1111 = vpop.permute.xlu0 %1110
        %1114 = vset.pattern.permute.xlu0 0
        %1115 = vperm.xlu0 %1114, %v957
        %v1116 = vpop.permute.xlu0 %1115
        %v1118 = vmul.f32 %v894, %v961
        %v1119 = vmul.f32 %v895, %v966
        %v1120 = vmul.f32 %v896, %v971
        %v1121 = vmul.f32 %v897, %v976
        %v1122 = vmul.f32 %v898, %v981
        %v1123 = vmul.f32 %v899, %v986
        %v1124 = vmul.f32 %v900, %v991
        %v1125 = vmul.f32 %v901, %v996
        %v1126 = vmul.f32 %v902, %v1001
        %v1127 = vmul.f32 %v903, %v1006
        %v1128 = vmul.f32 %v904, %v1011
        %v1129 = vmul.f32 %v905, %v1016
        %v1130 = vmul.f32 %v906, %v1021
        %v1131 = vmul.f32 %v907, %v1026
        %v1132 = vmul.f32 %v908, %v1031
        %v1133 = vmul.f32 %v909, %v1036
        %v1134 = vmul.f32 %v910, %v1041
        %v1135 = vmul.f32 %v911, %v1046
        %v1136 = vmul.f32 %v912, %v1051
        %v1137 = vmul.f32 %v913, %v1056
        %v1138 = vmul.f32 %v914, %v1061
        %v1139 = vmul.f32 %v915, %v1066
        %v1140 = vmul.f32 %v916, %v1071
        %v1141 = vmul.f32 %v917, %v1076
        %v1142 = vmul.f32 %v918, %v1081
        %v1143 = vmul.f32 %v919, %v1086
        %v1144 = vmul.f32 %v920, %v1091
        %v1145 = vmul.f32 %v921, %v1096
        %v1146 = vmul.f32 %v922, %v1101
        %v1147 = vmul.f32 %v923, %v1106
        %v1148 = vmul.f32 %v924, %v1111
        %v1149 = vmul.f32 %v925, %v1116
        %v1150 = vsel %vm684, %v1118, -inf
        %v1151 = vrot.slane %v1150, 4
        %v1152 = vmax.f32 %v1150, %v1151
        %v1153 = vrot.slane %v1152, 2
        %v1154 = vmax.f32 %v1152, %v1153
        %v1155 = vrot.slane %v1154, 1
        %v1156 = vmax.f32 %v1154, %v1155
        %v1157 = vsel %vm684, %v1119, -inf
        %v1158 = vrot.slane %v1157, 4
        %v1159 = vmax.f32 %v1157, %v1158
        %v1160 = vrot.slane %v1159, 2
        %v1161 = vmax.f32 %v1159, %v1160
        %v1162 = vrot.slane %v1161, 1
        %v1163 = vmax.f32 %v1161, %v1162
        %v1164 = vsel %vm684, %v1120, -inf
        %v1165 = vrot.slane %v1164, 4
        %v1166 = vmax.f32 %v1164, %v1165
        %v1167 = vrot.slane %v1166, 2
        %v1168 = vmax.f32 %v1166, %v1167
        %v1169 = vrot.slane %v1168, 1
        %v1170 = vmax.f32 %v1168, %v1169
        %v1171 = vsel %vm684, %v1121, -inf
        %v1172 = vrot.slane %v1171, 4
        %v1173 = vmax.f32 %v1171, %v1172
        %v1174 = vrot.slane %v1173, 2
        %v1175 = vmax.f32 %v1173, %v1174
        %v1176 = vrot.slane %v1175, 1
        %v1177 = vmax.f32 %v1175, %v1176
        %v1178 = vsel %vm684, %v1122, -inf
        %v1179 = vrot.slane %v1178, 4
        %v1180 = vmax.f32 %v1178, %v1179
        %v1181 = vrot.slane %v1180, 2
        %v1182 = vmax.f32 %v1180, %v1181
        %v1183 = vrot.slane %v1182, 1
        %v1184 = vmax.f32 %v1182, %v1183
        %v1185 = vsel %vm684, %v1123, -inf
        %v1186 = vrot.slane %v1185, 4
        %v1187 = vmax.f32 %v1185, %v1186
        %v1188 = vrot.slane %v1187, 2
        %v1189 = vmax.f32 %v1187, %v1188
        %v1190 = vrot.slane %v1189, 1
        %v1191 = vmax.f32 %v1189, %v1190
        %v1192 = vsel %vm684, %v1124, -inf
        %v1193 = vrot.slane %v1192, 4
        %v1194 = vmax.f32 %v1192, %v1193
        %v1195 = vrot.slane %v1194, 2
        %v1196 = vmax.f32 %v1194, %v1195
        %v1197 = vrot.slane %v1196, 1
        %v1198 = vmax.f32 %v1196, %v1197
        %v1199 = vsel %vm684, %v1125, -inf
        %v1200 = vrot.slane %v1199, 4
        %v1201 = vmax.f32 %v1199, %v1200
        %v1202 = vrot.slane %v1201, 2
        %v1203 = vmax.f32 %v1201, %v1202
        %v1204 = vrot.slane %v1203, 1
        %v1205 = vmax.f32 %v1203, %v1204
        %v1206 = vsel %vm684, %v1126, -inf
        %v1207 = vrot.slane %v1206, 4
        %v1208 = vmax.f32 %v1206, %v1207
        %v1209 = vrot.slane %v1208, 2
        %v1210 = vmax.f32 %v1208, %v1209
        %v1211 = vrot.slane %v1210, 1
        %v1212 = vmax.f32 %v1210, %v1211
        %v1213 = vsel %vm684, %v1127, -inf
        %v1214 = vrot.slane %v1213, 4
        %v1215 = vmax.f32 %v1213, %v1214
        %v1216 = vrot.slane %v1215, 2
        %v1217 = vmax.f32 %v1215, %v1216
        %v1218 = vrot.slane %v1217, 1
        %v1219 = vmax.f32 %v1217, %v1218
        %v1220 = vsel %vm684, %v1128, -inf
        %v1221 = vrot.slane %v1220, 4
        %v1222 = vmax.f32 %v1220, %v1221
        %v1223 = vrot.slane %v1222, 2
        %v1224 = vmax.f32 %v1222, %v1223
        %v1225 = vrot.slane %v1224, 1
        %v1226 = vmax.f32 %v1224, %v1225
        %v1227 = vsel %vm684, %v1129, -inf
        %v1228 = vrot.slane %v1227, 4
        %v1229 = vmax.f32 %v1227, %v1228
        %v1230 = vrot.slane %v1229, 2
        %v1231 = vmax.f32 %v1229, %v1230
        %v1232 = vrot.slane %v1231, 1
        %v1233 = vmax.f32 %v1231, %v1232
        %v1234 = vsel %vm684, %v1130, -inf
        %v1235 = vrot.slane %v1234, 4
        %v1236 = vmax.f32 %v1234, %v1235
        %v1237 = vrot.slane %v1236, 2
        %v1238 = vmax.f32 %v1236, %v1237
        %v1239 = vrot.slane %v1238, 1
        %v1240 = vmax.f32 %v1238, %v1239
        %v1241 = vsel %vm684, %v1131, -inf
        %v1242 = vrot.slane %v1241, 4
        %v1243 = vmax.f32 %v1241, %v1242
        %v1244 = vrot.slane %v1243, 2
        %v1245 = vmax.f32 %v1243, %v1244
        %v1246 = vrot.slane %v1245, 1
        %v1247 = vmax.f32 %v1245, %v1246
        %v1248 = vsel %vm684, %v1132, -inf
        %v1249 = vrot.slane %v1248, 4
        %v1250 = vmax.f32 %v1248, %v1249
        %v1251 = vrot.slane %v1250, 2
        %v1252 = vmax.f32 %v1250, %v1251
        %v1253 = vrot.slane %v1252, 1
        %v1254 = vmax.f32 %v1252, %v1253
        %v1255 = vsel %vm684, %v1133, -inf
        %v1256 = vrot.slane %v1255, 4
        %v1257 = vmax.f32 %v1255, %v1256
        %v1258 = vrot.slane %v1257, 2
        %v1259 = vmax.f32 %v1257, %v1258
        %v1260 = vrot.slane %v1259, 1
        %v1261 = vmax.f32 %v1259, %v1260
        %v1262 = vsel %vm684, %v1134, -inf
        %v1263 = vrot.slane %v1262, 4
        %v1264 = vmax.f32 %v1262, %v1263
        %v1265 = vrot.slane %v1264, 2
        %v1266 = vmax.f32 %v1264, %v1265
        %v1267 = vrot.slane %v1266, 1
        %v1268 = vmax.f32 %v1266, %v1267
        %v1269 = vsel %vm684, %v1135, -inf
        %v1270 = vrot.slane %v1269, 4
        %v1271 = vmax.f32 %v1269, %v1270
        %v1272 = vrot.slane %v1271, 2
        %v1273 = vmax.f32 %v1271, %v1272
        %v1274 = vrot.slane %v1273, 1
        %v1275 = vmax.f32 %v1273, %v1274
        %v1276 = vsel %vm684, %v1136, -inf
        %v1277 = vrot.slane %v1276, 4
        %v1278 = vmax.f32 %v1276, %v1277
        %v1279 = vrot.slane %v1278, 2
        %v1280 = vmax.f32 %v1278, %v1279
        %v1281 = vrot.slane %v1280, 1
        %v1282 = vmax.f32 %v1280, %v1281
        %v1283 = vsel %vm684, %v1137, -inf
        %v1284 = vrot.slane %v1283, 4
        %v1285 = vmax.f32 %v1283, %v1284
        %v1286 = vrot.slane %v1285, 2
        %v1287 = vmax.f32 %v1285, %v1286
        %v1288 = vrot.slane %v1287, 1
        %v1289 = vmax.f32 %v1287, %v1288
        %v1290 = vsel %vm684, %v1138, -inf
        %v1291 = vrot.slane %v1290, 4
        %v1292 = vmax.f32 %v1290, %v1291
        %v1293 = vrot.slane %v1292, 2
        %v1294 = vmax.f32 %v1292, %v1293
        %v1295 = vrot.slane %v1294, 1
        %v1296 = vmax.f32 %v1294, %v1295
        %v1297 = vsel %vm684, %v1139, -inf
        %v1298 = vrot.slane %v1297, 4
        %v1299 = vmax.f32 %v1297, %v1298
        %v1300 = vrot.slane %v1299, 2
        %v1301 = vmax.f32 %v1299, %v1300
        %v1302 = vrot.slane %v1301, 1
        %v1303 = vmax.f32 %v1301, %v1302
        %v1304 = vsel %vm684, %v1140, -inf
        %v1305 = vrot.slane %v1304, 4
        %v1306 = vmax.f32 %v1304, %v1305
        %v1307 = vrot.slane %v1306, 2
        %v1308 = vmax.f32 %v1306, %v1307
        %v1309 = vrot.slane %v1308, 1
        %v1310 = vmax.f32 %v1308, %v1309
        %v1311 = vsel %vm684, %v1141, -inf
        %v1312 = vrot.slane %v1311, 4
        %v1313 = vmax.f32 %v1311, %v1312
        %v1314 = vrot.slane %v1313, 2
        %v1315 = vmax.f32 %v1313, %v1314
        %v1316 = vrot.slane %v1315, 1
        %v1317 = vmax.f32 %v1315, %v1316
        %v1318 = vsel %vm684, %v1142, -inf
        %v1319 = vrot.slane %v1318, 4
        %v1320 = vmax.f32 %v1318, %v1319
        %v1321 = vrot.slane %v1320, 2
        %v1322 = vmax.f32 %v1320, %v1321
        %v1323 = vrot.slane %v1322, 1
        %v1324 = vmax.f32 %v1322, %v1323
        %v1325 = vsel %vm684, %v1143, -inf
        %v1326 = vrot.slane %v1325, 4
        %v1327 = vmax.f32 %v1325, %v1326
        %v1328 = vrot.slane %v1327, 2
        %v1329 = vmax.f32 %v1327, %v1328
        %v1330 = vrot.slane %v1329, 1
        %v1331 = vmax.f32 %v1329, %v1330
        %v1332 = vsel %vm684, %v1144, -inf
        %v1333 = vrot.slane %v1332, 4
        %v1334 = vmax.f32 %v1332, %v1333
        %v1335 = vrot.slane %v1334, 2
        %v1336 = vmax.f32 %v1334, %v1335
        %v1337 = vrot.slane %v1336, 1
        %v1338 = vmax.f32 %v1336, %v1337
        %v1339 = vsel %vm684, %v1145, -inf
        %v1340 = vrot.slane %v1339, 4
        %v1341 = vmax.f32 %v1339, %v1340
        %v1342 = vrot.slane %v1341, 2
        %v1343 = vmax.f32 %v1341, %v1342
        %v1344 = vrot.slane %v1343, 1
        %v1345 = vmax.f32 %v1343, %v1344
        %v1346 = vsel %vm684, %v1146, -inf
        %v1347 = vrot.slane %v1346, 4
        %v1348 = vmax.f32 %v1346, %v1347
        %v1349 = vrot.slane %v1348, 2
        %v1350 = vmax.f32 %v1348, %v1349
        %v1351 = vrot.slane %v1350, 1
        %v1352 = vmax.f32 %v1350, %v1351
        %v1353 = vsel %vm684, %v1147, -inf
        %v1354 = vrot.slane %v1353, 4
        %v1355 = vmax.f32 %v1353, %v1354
        %v1356 = vrot.slane %v1355, 2
        %v1357 = vmax.f32 %v1355, %v1356
        %v1358 = vrot.slane %v1357, 1
        %v1359 = vmax.f32 %v1357, %v1358
        %v1360 = vsel %vm684, %v1148, -inf
        %v1361 = vrot.slane %v1360, 4
        %v1362 = vmax.f32 %v1360, %v1361
        %v1363 = vrot.slane %v1362, 2
        %v1364 = vmax.f32 %v1362, %v1363
        %v1365 = vrot.slane %v1364, 1
        %v1366 = vmax.f32 %v1364, %v1365
        %v1367 = vsel %vm684, %v1149, -inf
        %v1368 = vrot.slane %v1367, 4
        %v1369 = vmax.f32 %v1367, %v1368
        %v1370 = vrot.slane %v1369, 2
        %v1371 = vmax.f32 %v1369, %v1370
        %v1372 = vrot.slane %v1371, 1
        %v1373 = vmax.f32 %v1371, %v1372
        %vm1406 = vcmask 1041409
        %v1407 = vsel %vm1406, %v1163, %v1156
        %vm1408 = vcmask 1042434
        %v1409 = vsel %vm1408, %v1170, %v1407
        %vm1410 = vcmask 1043459
        %v1411 = vsel %vm1410, %v1177, %v1409
        %vm1412 = vcmask 1044484
        %v1413 = vsel %vm1412, %v1184, %v1411
        %vm1414 = vcmask 1045509
        %v1415 = vsel %vm1414, %v1191, %v1413
        %vm1416 = vcmask 1046534
        %v1417 = vsel %vm1416, %v1198, %v1415
        %vm1418 = vcmask 1047559
        %v1419 = vsel %vm1418, %v1205, %v1417
        %v1420 = vsel %vm1406, %v1219, %v1212
        %v1421 = vsel %vm1408, %v1226, %v1420
        %v1422 = vsel %vm1410, %v1233, %v1421
        %v1423 = vsel %vm1412, %v1240, %v1422
        %v1424 = vsel %vm1414, %v1247, %v1423
        %v1425 = vsel %vm1416, %v1254, %v1424
        %v1426 = vsel %vm1418, %v1261, %v1425
        %v1427 = vsel %vm1406, %v1275, %v1268
        %v1428 = vsel %vm1408, %v1282, %v1427
        %v1429 = vsel %vm1410, %v1289, %v1428
        %v1430 = vsel %vm1412, %v1296, %v1429
        %v1431 = vsel %vm1414, %v1303, %v1430
        %v1432 = vsel %vm1416, %v1310, %v1431
        %v1433 = vsel %vm1418, %v1317, %v1432
        %v1434 = vsel %vm1406, %v1331, %v1324
        %v1435 = vsel %vm1408, %v1338, %v1434
        %v1436 = vsel %vm1410, %v1345, %v1435
        %v1437 = vsel %vm1412, %v1352, %v1436
        %v1438 = vsel %vm1414, %v1359, %v1437
        %v1439 = vsel %vm1416, %v1366, %v1438
        %v1440 = vsel %vm1418, %v1373, %v1439
        %1445 = vst.msk [vmem:[%s261] sm:$0xff] %vm684, %v1419
        %1446 = vst.msk [vmem:[%s261 + $0x8] sm:$0xff] %vm684, %v1426
        %1447 = vst.msk [vmem:[%s261 + $0x10] sm:$0xff] %vm684, %v1433
        %1448 = vst.msk [vmem:[%s261 + $0x18] sm:$0xff] %vm684, %v1440
        %s1449 = sand.u32 %s164, 1
        %s1450 = scalar_lea.sflag [#allocation3], %s1449
        %s1451 = sand.u32 %s164, 1
        %s1452 = smul.addr %s1451, 32
        %s1453 = scalar_lea.vmem [#allocation2], %s1452
        // Predicated region
        $region45: #{sa_module_forward.1} parent=43 // pred_check
          %p1454 = pneg %p174
        $region46: #{sa_module_forward.1} parent=43 // pred_check_branch
          %1456 = sbr.rel (%p1454) target = $region48
        $region47: #{sa_module_forward.1} parent=43 // pred_region
          %s1457 = smul.u32 4, %s20
          %s1459 = ssub.s32 512, 512
          %1460 = vsyncadd %s1450, %s1459
          %s1461 = smul.addr %s1457, 128
          %s1462 = scalar_lea.hbm %s6, %s1461
          %s1463 = sshll.u32 %s1453, 4
          %s1464 = int_to_ptr.vmem [resolvable:$true] %s1463
          %1469 = dma.vmem_to_hbm [thread:$0]  %s1464, 512, %s1462, %s1450, 128, 128, 8
        $region48: #{sa_module_forward.1} parent=43 // pred_fallthru
          _
      $region44: #{sa_module_forward.1} parent=5 // pred_fallthru
        _
      %p1470 = scmp.le.s32.totalorder 2, %s15
      // Predicated region
      $region49: #{sa_module_forward.1} parent=5 // pred_check
        %p1471 = pneg %p1470
      $region50: #{sa_module_forward.1} parent=5 // pred_check_branch
        %1473 = sbr.rel (%p1471) target = $region52
      $region51: #{sa_module_forward.1} parent=5 // pred_region
        %s1474 = ssub.s32 %s15, 2
        // Predicated region
        $region53: #{sa_module_forward.1} parent=51 // pred_check
          %p1475 = pneg %p180
        $region54: #{sa_module_forward.1} parent=51 // pred_check_branch
          %1477 = sbr.rel (%p1475) target = $region56
        $region55: #{sa_module_forward.1} parent=51 // pred_region
          %s1478 = sand.u32 %s165, 1
          %s1479 = scalar_lea.sflag [#allocation3], %s1478
          %s1480 = sand.u32 %s165, 1
          %s1481 = smul.addr %s1480, 32
          %s1482 = scalar_lea.vmem [#allocation2], %s1481
          %1483 = dma.done %s1479, 512
        $region56: #{sa_module_forward.1} parent=51 // pred_fallthru
          _
      $region52: #{sa_module_forward.1} parent=5 // pred_fallthru
        _
    $region6: #{sa_module_forward.1} parent=1 // loop_footer
      %s19 = sadd.s32 1, %s15
    $region7: #{sa_module_forward.1} parent=1 // loop_footer_branch
      %14 = sbr.rel target = $region3
    $region8: #{sa_module_forward.1} parent=1 // loop_exit
      _
    %1484 = vsyncpa [#allocation3], 1
    %s1485 = scalar_lea.sflag [#allocation3], 1
    %1486 = vsyncpa %s1485, 1

</llo_original>
